<compile_context>
chip_gen: v6e
topology: v6e:2x2x1
jax: 0.10.0
libtpu: 0.0.40
codegen_flags: <defaults>
</compile_context>

<pallas_src>
import functools

import jax
import jax.numpy as jnp
from jax.experimental import pallas as pl
from jax.experimental.pallas import tpu as pltpu


def planar_flow_kernel(scal_ref, z_ref, m_ref, u_ref, znew_ref, logdet_ref, *,
                       K: int, D: int):
    # SMEM scalars: bias b and the hoisted dot product w·u.
    b = scal_ref[0]
    wu = scal_ref[1]

    z_io = z_ref[...]                               # (tb, K*D) in the I/O dtype
    zf = z_io.astype(jnp.float32)

    # MXU: block-diagonal matmul gives w·z_seg broadcast across each segment's
    # D lanes (f32 matrix + f32 accumulation for the 1e-5-atol f32 path).
    lin = jnp.dot(zf, m_ref[...], preferred_element_type=jnp.float32) + b
    t = jnp.tanh(lin)                               # one dense EUP pass

    # z' = z + u * tanh(.): full-width VPU pair; add/store in the wire dtype so
    # bf16 I/O stays bf16 on the dominant elementwise stream.
    upd = u_ref[...] * t                            # (1, KD) x (tb, KD) f32
    znew_ref[...] = (z_io + upd.astype(z_io.dtype)).astype(znew_ref.dtype)

    # log|det J| = log(|1 + (1 - t^2) * (w·u)| + 1e-8), evaluated once on a
    # narrow (tb, K) slab (lane 0 of each segment -- all D lanes are identical).
    if K == 1:
        t_n = t[:, 0:1]
    else:
        t_n = jnp.concatenate([t[:, j * D:j * D + 1] for j in range(K)], axis=-1)
    uT_psi = (1.0 - t_n * t_n) * wu
    logdet_ref[...] = jnp.log(jnp.abs(1.0 + uT_psi) + 1e-8)


def planar_flow(z, u, w, b, *, tile_rows=None):
    """z: (B, D); u, w: (D,); b: (1,) or scalar.

    Returns (z_new (B, D) in z.dtype, log_abs_det (B,) float32)."""
    B, D = z.shape
    out_dtype = z.dtype
    f32 = jnp.float32

    # ---- lane packing: fold k consecutive rows into one lane-dense row -------
    k = max(1, 128 // D) if D < 128 else 1
    B_k = B + ((-B) % k) if k > 1 else B            # pad batch to a multiple of k
    Bp, KD = B_k // k, k * D

    # ---- scalars for the SMEM path: [b, w·u] ---------------------------------
    w_f32 = w.astype(f32)
    u_f32 = u.astype(f32)
    wu = jnp.sum(w_f32 * u_f32)
    scalars = jnp.stack([jnp.reshape(b, ()).astype(f32), wu])

    # ---- constant operands (resident in VMEM) --------------------------------
    # Block-diagonal M: M[i, j] = w[i % D] if i//D == j//D else 0.
    M = jnp.kron(jnp.eye(k, dtype=f32), jnp.broadcast_to(w_f32[:, None], (D, D)))
    u_tiled = jnp.tile(u_f32, (k,)).reshape(1, KD)

    # ---- tiling: ~3 MiB (f32-equivalent) z blocks, cdiv grid, >=2 steps ------
    if tile_rows is None:
        target_rows = max(8, (3 * 1024 * 1024) // (KD * 4))
        n_tiles = pl.cdiv(Bp, target_rows)
        if Bp >= 16:
            n_tiles = max(n_tiles, 2)        # v7x: shard across both TensorCores
        tile_rows = pl.cdiv(Bp, n_tiles)
    tile_rows = max(8, ((int(tile_rows) + 7) // 8) * 8)
    n_tiles = pl.cdiv(Bp, tile_rows)
    Bp_pad = n_tiles * tile_rows

    # ---- zero-pad (packed) rows; padded outputs are discarded ----------------
    zp = z
    if B_k != B:
        zp = jnp.pad(zp, ((0, B_k - B), (0, 0)))
    zp = zp.reshape(Bp, KD)
    if Bp_pad != Bp:
        zp = jnp.pad(zp, ((0, Bp_pad - Bp), (0, 0)))

    kernel = functools.partial(planar_flow_kernel, K=k, D=D)
    zp_new, logdet = pl.pallas_call(
        kernel,
        out_shape=(
            jax.ShapeDtypeStruct((Bp_pad, KD), out_dtype),
            jax.ShapeDtypeStruct((Bp_pad, k), jnp.float32),
        ),
        grid_spec=pltpu.PrefetchScalarGridSpec(
            num_scalar_prefetch=1,                                  # [b, w·u]
            grid=(n_tiles,),
            in_specs=[
                pl.BlockSpec((tile_rows, KD), lambda i, s: (i, 0)),  # z (packed)
                pl.BlockSpec((KD, KD), lambda i, s: (0, 0)),         # M (resident)
                pl.BlockSpec((1, KD), lambda i, s: (0, 0)),          # u (tiled)
            ],
            out_specs=[
                pl.BlockSpec((tile_rows, KD), lambda i, s: (i, 0)),  # z_new
                pl.BlockSpec((tile_rows, k), lambda i, s: (i, 0)),   # log|det|
            ],
        ),
        compiler_params=pltpu.CompilerParams(
            dimension_semantics=("parallel",),
            vmem_limit_bytes=32 * 1024 * 1024,
        ),
    )(scalars, zp, M, u_tiled)

    z_new = zp_new[:Bp].reshape(B_k, D)[:B]
    log_abs_det = logdet[:Bp].reshape(B_k)[:B]
    return z_new, log_abs_det


def planar_flow_ref(z, u, w, b):
    """Pure-JAX reference mirroring the PyTorch module."""
    z = z.astype(jnp.float32)
    u = u.astype(jnp.float32)
    w = w.astype(jnp.float32)
    b = b.astype(jnp.float32)
    linear = jnp.matmul(z, w.reshape(-1, 1), precision="highest") + b  # (B, 1)
    h = jnp.tanh(linear)
    z_new = z + u * h
    psi = (1.0 - jnp.tanh(linear) ** 2) * w
    uT_psi = jnp.matmul(psi, u.reshape(-1, 1), precision="highest").squeeze(-1)
    log_abs_det = jnp.log(jnp.abs(1.0 + uT_psi) + 1e-8)
    return z_new, log_abs_det


if __name__ == "__main__":
    key = jax.random.PRNGKey(0)
    k_u, k_w, k_b, k_z = jax.random.split(key, 4)

    B, D = 8, 32    # (batch, latent dim) consistent with PlanarFlow(dim=32)
    u = jax.random.normal(k_u, (D,), dtype=jnp.float32)
    w = jax.random.normal(k_w, (D,), dtype=jnp.float32)
    b = jax.random.normal(k_b, (1,), dtype=jnp.float32)
    z = jax.random.normal(k_z, (B, D), dtype=jnp.float32)

    z_new, log_det = planar_flow(z, u, w, b)
    jax.block_until_ready((z_new, log_det))
    z_new_ref, log_det_ref = planar_flow_ref(z, u, w, b)
    assert z_new.shape == (B, D) and log_det.shape == (B,)
    assert jnp.allclose(z_new, z_new_ref, atol=2e-5, rtol=2e-5)
    assert jnp.allclose(log_det, log_det_ref, atol=1e-3, rtol=1e-3)

    # Multi-step grid (packed rows Bp=16, 8-row tiles -> grid=(2,)).
    B2 = 64
    z2 = jax.random.normal(jax.random.PRNGKey(1), (B2, D), dtype=jnp.float32)
    z2_new, ld2 = planar_flow(z2, u, w, b, tile_rows=8)
    jax.block_until_ready((z2_new, ld2))
    z2_ref, ld2_ref = planar_flow_ref(z2, u, w, b)
    assert jnp.allclose(z2_new, z2_ref, atol=2e-5, rtol=2e-5)
    assert jnp.allclose(ld2, ld2_ref, atol=1e-3, rtol=1e-3)

    # Ragged batch: exercises the pack-pad + cdiv/pad grid path (B=23 -> 24 rows
    # packed into 6 -> padded to one 8-row block).
    B3 = 23
    z3 = jax.random.normal(jax.random.PRNGKey(2), (B3, D), dtype=jnp.float32)
    z3_new, ld3 = planar_flow(z3, u, w, b)
    jax.block_until_ready((z3_new, ld3))
    z3_ref, ld3_ref = planar_flow_ref(z3, u, w, b)
    assert z3_new.shape == (B3, D) and ld3.shape == (B3,)
    assert jnp.allclose(z3_new, z3_ref, atol=2e-5, rtol=2e-5)
    assert jnp.allclose(ld3, ld3_ref, atol=1e-3, rtol=1e-3)

    # bf16 I/O path: bf16 on the wire + bf16 elementwise update, f32 linear/tanh.
    zb = z2.astype(jnp.bfloat16)
    zb_new, ldb = planar_flow(zb, u, w, b, tile_rows=8)
    jax.block_until_ready((zb_new, ldb))
    zb_ref, ldb_ref = planar_flow_ref(zb, u, w, b)   # ref sees same rounded input
    assert zb_new.dtype == jnp.bfloat16
    assert jnp.allclose(zb_new.astype(jnp.float32), zb_ref, atol=2e-2, rtol=2e-2)
    assert jnp.allclose(ldb, ldb_ref, atol=1e-3, rtol=1e-3)

    print("KERNEL_OK")
</pallas_src>

<mosaic_0001>
module attributes {stable_mosaic.version = 11 : i64} {
  func.func @planar_flow_kernel(%arg0: i32, %arg1: memref<2xf32, #tpu.memory_space<smem>>, %arg2: memref<8x128xf32, #tpu.memory_space<vmem>>, %arg3: memref<128x128xf32, #tpu.memory_space<vmem>>, %arg4: memref<1x128xf32, #tpu.memory_space<vmem>>, %arg5: memref<8x128xf32, #tpu.memory_space<vmem>>, %arg6: memref<8x4xf32, #tpu.memory_space<vmem>>) attributes {dimension_semantics = [#tpu.dimension_semantics<parallel>], iteration_bounds = array<i64: 1>, scalar_prefetch = 1 : i64, scratch_operands = 0 : i64, tpu.core_type = #tpu.core_type<tc>, window_params = [{transform_indices = @transform_0, window_bounds = array<i64: 8, 128>}, {pipeline_mode = #tpu.pipeline_mode<synchronous>, transform_indices = @transform_1, window_bounds = array<i64: 128, 128>}, {pipeline_mode = #tpu.pipeline_mode<synchronous>, transform_indices = @transform_2, window_bounds = array<i64: 1, 128>}, {transform_indices = @transform_3, window_bounds = array<i64: 8, 128>}, {transform_indices = @transform_4, window_bounds = array<i64: 8, 4>}]} {
    %c0 = arith.constant 0 : index
    %0 = memref.load %arg1[%c0] : memref<2xf32, #tpu.memory_space<smem>>
    %c1 = arith.constant 1 : index
    %1 = memref.load %arg1[%c1] : memref<2xf32, #tpu.memory_space<smem>>
    %c0_0 = arith.constant 0 : index
    %c0_1 = arith.constant 0 : index
    %2 = vector.load %arg2[%c0_0, %c0_1] : memref<8x128xf32, #tpu.memory_space<vmem>>, vector<8x128xf32>
    %c0_2 = arith.constant 0 : index
    %c0_3 = arith.constant 0 : index
    %3 = vector.load %arg3[%c0_2, %c0_3] : memref<128x128xf32, #tpu.memory_space<vmem>>, vector<128x128xf32>
    %cst = arith.constant dense<0.000000e+00> : vector<8x128xf32>
    %4 = tpu.matmul %2, %3, %cst {dimension_numbers = #tpu.dot_dimension_numbers<[1], [0], [0], [1], [0, 0, 1, 1], [], []>} : vector<8x128xf32>, vector<128x128xf32>, vector<8x128xf32> -> vector<8x128xf32>
    %5 = vector.broadcast %0 : f32 to vector<8x128xf32>
    %6 = arith.addf %4, %5 : vector<8x128xf32>
    %7 = math.tanh %6 : vector<8x128xf32>
    %c0_4 = arith.constant 0 : index
    %c0_5 = arith.constant 0 : index
    %8 = vector.load %arg4[%c0_4, %c0_5] : memref<1x128xf32, #tpu.memory_space<vmem>>, vector<1x128xf32>
    %9 = vector.broadcast %8 : vector<1x128xf32> to vector<8x128xf32>
    %10 = arith.mulf %9, %7 : vector<8x128xf32>
    %11 = arith.addf %2, %10 : vector<8x128xf32>
    %c0_6 = arith.constant 0 : index
    %c0_7 = arith.constant 0 : index
    %12 = vector.load %arg5[%c0_6, %c0_7] : memref<8x128xf32, #tpu.memory_space<vmem>>, vector<8x128xf32>
    tpu.vector_store %arg5[%c0_6, %c0_7], %11 {strides = array<i32>} : memref<8x128xf32, #tpu.memory_space<vmem>>, vector<8x128xf32>,
    %13 = vector.extract_strided_slice %7 {offsets = [0, 0], sizes = [8, 1], strides = [1, 1]} : vector<8x128xf32> to vector<8x1xf32>
    %14 = vector.extract_strided_slice %7 {offsets = [0, 32], sizes = [8, 1], strides = [1, 1]} : vector<8x128xf32> to vector<8x1xf32>
    %15 = vector.extract_strided_slice %7 {offsets = [0, 64], sizes = [8, 1], strides = [1, 1]} : vector<8x128xf32> to vector<8x1xf32>
    %16 = vector.extract_strided_slice %7 {offsets = [0, 96], sizes = [8, 1], strides = [1, 1]} : vector<8x128xf32> to vector<8x1xf32>
    %17 = tpu.concatenate %13, %14, %15, %16 in 1 : vector<8x1xf32>, vector<8x1xf32>, vector<8x1xf32>, vector<8x1xf32> -> vector<8x4xf32>
    %18 = arith.mulf %17, %17 : vector<8x4xf32>
    %cst_8 = arith.constant 1.000000e+00 : f32
    %19 = vector.broadcast %cst_8 : f32 to vector<8x4xf32>
    %20 = arith.subf %19, %18 : vector<8x4xf32>
    %21 = vector.broadcast %1 : f32 to vector<8x4xf32>
    %22 = arith.mulf %20, %21 : vector<8x4xf32>
    %cst_9 = arith.constant 1.000000e+00 : f32
    %23 = vector.broadcast %cst_9 : f32 to vector<8x4xf32>
    %24 = arith.addf %23, %22 : vector<8x4xf32>
    %25 = math.absf %24 : vector<8x4xf32>
    %cst_10 = arith.constant 9.99999993E-9 : f32
    %26 = vector.broadcast %cst_10 : f32 to vector<8x4xf32>
    %27 = arith.addf %25, %26 : vector<8x4xf32>
    %28 = math.log %27 : vector<8x4xf32>
    %c0_11 = arith.constant 0 : index
    %c0_12 = arith.constant 0 : index
    %29 = vector.load %arg6[%c0_11, %c0_12] : memref<8x4xf32, #tpu.memory_space<vmem>>, vector<8x4xf32>
    tpu.vector_store %arg6[%c0_11, %c0_12], %28 {strides = array<i32>} : memref<8x4xf32, #tpu.memory_space<vmem>>, vector<8x4xf32>,
    return
  }
  func.func @transform_0(%arg0: i32, %arg1: memref<2xf32, #tpu.memory_space<smem>>) -> (i32, i32) {
    %c0_i32 = arith.constant 0 : i32
    %c0_i32_0 = arith.constant 0 : i32
    return %arg0, %c0_i32 : i32, i32
  }
  func.func @transform_1(%arg0: i32, %arg1: memref<2xf32, #tpu.memory_space<smem>>) -> (i32, i32) {
    %c0_i32 = arith.constant 0 : i32
    %c0_i32_0 = arith.constant 0 : i32
    %c0_i32_1 = arith.constant 0 : i32
    return %c0_i32, %c0_i32_0 : i32, i32
  }
  func.func @transform_2(%arg0: i32, %arg1: memref<2xf32, #tpu.memory_space<smem>>) -> (i32, i32) {
    %c0_i32 = arith.constant 0 : i32
    %c0_i32_0 = arith.constant 0 : i32
    %c0_i32_1 = arith.constant 0 : i32
    return %c0_i32, %c0_i32_0 : i32, i32
  }
  func.func @transform_3(%arg0: i32, %arg1: memref<2xf32, #tpu.memory_space<smem>>) -> (i32, i32) {
    %c0_i32 = arith.constant 0 : i32
    %c0_i32_0 = arith.constant 0 : i32
    return %arg0, %c0_i32 : i32, i32
  }
  func.func @transform_4(%arg0: i32, %arg1: memref<2xf32, #tpu.memory_space<smem>>) -> (i32, i32) {
    %c0_i32 = arith.constant 0 : i32
    %c0_i32_0 = arith.constant 0 : i32
    return %arg0, %c0_i32 : i32, i32
  }
}

</mosaic_0001>

<llo_original>
// kernel: tpu_custom_call.1
$region0: #{tpu_custom_call.1}
  #allocation0 [shape = 'u32[]', space=smem, size = 0x4, offset = 0x4, fixed_abs, tag = 'smem constant byte address 0x4 - core index']
  #allocation1 [shape = 'u32[144,128]{1,0:T(1,128)}', space=vmem, size = 0x12000, scoped, tag = 'internal scratch']
  #allocation2 [shape = 's32[1]{0}', space=sflag, size = 0x4, scoped, tag = 'scoped memory for tpu_custom_call.1']
  #allocation3 [shape = 'u8[512]{0}', space=smem, size = 0x200, scoped, tag = 'prefetched SMEM operand 0']
  %s0 = inlined_call_operand.hbm [shape: f32[2], index: 0, kind: input, shape index: {}]
  %s1 = inlined_call_operand.hbm [shape: f32[8,128], index: 1, kind: input, shape index: {}]
  %s2 = inlined_call_operand.hbm [shape: f32[128,128], index: 2, kind: input, shape index: {}]
  %s3 = inlined_call_operand.vmem [shape: f32[1,128], index: 3, kind: input, shape index: {}]
  %s4 = inlined_call_operand.hbm [shape: f32[8,128], index: 4, kind: output, shape index: {0}]
  %s5 = inlined_call_operand.vmem [shape: f32[8,4], index: 5, kind: output, shape index: {1}]
  %6 = xla_tuple %s4, %s5
  %s7 = sld [smem:[#allocation0]]
  $region38: #{tpu_custom_call.1} parent=0
    _
  %s9 = ssub.s32 1, %s7
  %s10 = scalar_select 0, %s9, %s7
  %12 = dma.hbm_to_smem %s0, 16, [#allocation3], [#allocation2]
  %13 = dma.done [#allocation2], 16
  %14 = sfence
  $region1: #{tpu_custom_call.1} parent=0
    #allocation4 [shape = 'u8[4096]{0}', space=vmem, size = 0x1000, scoped, tag = 'input window, operand 1, single buffered']
    #allocation5 [shape = 's32[1]{0}', space=sflag, size = 0x4, scoped, tag = 'scoped memory for tpu_custom_call.1']
    #allocation6 [shape = 's32[1]{0}', space=sflag, size = 0x4, scoped, tag = 'scoped memory for tpu_custom_call.1']
    #allocation7 [shape = 'u8[65536]{0}', space=vmem, size = 0x10000, scoped, tag = 'input window, operand 2, single buffered']
    #allocation8 [shape = 's32[1]{0}', space=sflag, size = 0x4, scoped, tag = 'scoped memory for tpu_custom_call.1']
    #allocation9 [shape = 'u8[4096]{0}', space=vmem, size = 0x1000, scoped, tag = 'output window, operand 0, single buffered']
    %15 = vsyncpa [#allocation5], 0
    %16 = vsyncpa [#allocation8], 0
    %17 = vsyncpa [#allocation6], 0
    // Predicated region
    $region2: #{tpu_custom_call.1} parent=1 // pred_check
      _
    $region3: #{tpu_custom_call.1} parent=1 // pred_check_branch
      %19 = sbr.rel (0) target = $region5
    $region4: #{tpu_custom_call.1} parent=1 // pred_region
      %s21 = ssub.s32 128, 128
      %22 = vsyncadd [#allocation5], %s21
      %s24 = sshll.u32 [#allocation4], 4
      %s25 = int_to_ptr.vmem [resolvable:$true] %s24
      %27 = dma.hbm_to_vmem [thread:$0]  %s1, 128, %s25, [#allocation5]
    $region5: #{tpu_custom_call.1} parent=1 // pred_fallthru
      _
    // Predicated region
    $region6: #{tpu_custom_call.1} parent=1 // pred_check
      _
    $region7: #{tpu_custom_call.1} parent=1 // pred_check_branch
      %29 = sbr.rel (0) target = $region9
    $region8: #{tpu_custom_call.1} parent=1 // pred_region
      %s31 = ssub.s32 2048, 2048
      %32 = vsyncadd [#allocation8], %s31
      %s33 = sshll.u32 [#allocation7], 4
      %s34 = int_to_ptr.vmem [resolvable:$true] %s33
      %39 = dma.hbm_to_vmem [thread:$0]  %s2, 2048, %s34, [#allocation8], 128, 128, 8
    $region9: #{tpu_custom_call.1} parent=1 // pred_fallthru
      _
    // Predicated region
    $region10: #{tpu_custom_call.1} parent=1 // pred_check
      _
    $region11: #{tpu_custom_call.1} parent=1 // pred_check_branch
      %41 = sbr.rel (0) target = $region13
    $region12: #{tpu_custom_call.1} parent=1 // pred_region
      _
    $region13: #{tpu_custom_call.1} parent=1 // pred_fallthru
      _
    // Predicated region
    $region14: #{tpu_custom_call.1} parent=1 // pred_check
      _
    $region15: #{tpu_custom_call.1} parent=1 // pred_check_branch
      %43 = sbr.rel (0) target = $region17
    $region16: #{tpu_custom_call.1} parent=1 // pred_region
      %44 = dma.done [#allocation5], 128
    $region17: #{tpu_custom_call.1} parent=1 // pred_fallthru
      _
    // Predicated region
    $region18: #{tpu_custom_call.1} parent=1 // pred_check
      _
    $region19: #{tpu_custom_call.1} parent=1 // pred_check_branch
      %46 = sbr.rel (0) target = $region21
    $region20: #{tpu_custom_call.1} parent=1 // pred_region
      %47 = dma.done [#allocation8], 2048
    $region21: #{tpu_custom_call.1} parent=1 // pred_fallthru
      _
    %s48 = sld [smem:[#allocation3]]
    %s49 = sld [smem:[#allocation3 + $0x1]]
    %v50 = vld [vmem:[#allocation4] sm:$0xff]
    %v51 = vld [vmem:[#allocation7] sm:$0xff]
    %v52 = vld [vmem:[#allocation7 + $0x8] sm:$0xff]
    %v53 = vld [vmem:[#allocation7 + $0x10] sm:$0xff]
    %v54 = vld [vmem:[#allocation7 + $0x18] sm:$0xff]
    %v55 = vld [vmem:[#allocation7 + $0x20] sm:$0xff]
    %v56 = vld [vmem:[#allocation7 + $0x28] sm:$0xff]
    %v57 = vld [vmem:[#allocation7 + $0x30] sm:$0xff]
    %v58 = vld [vmem:[#allocation7 + $0x38] sm:$0xff]
    %v59 = vld [vmem:[#allocation7 + $0x40] sm:$0xff]
    %v60 = vld [vmem:[#allocation7 + $0x48] sm:$0xff]
    %v61 = vld [vmem:[#allocation7 + $0x50] sm:$0xff]
    %v62 = vld [vmem:[#allocation7 + $0x58] sm:$0xff]
    %v63 = vld [vmem:[#allocation7 + $0x60] sm:$0xff]
    %v64 = vld [vmem:[#allocation7 + $0x68] sm:$0xff]
    %v65 = vld [vmem:[#allocation7 + $0x70] sm:$0xff]
    %v66 = vld [vmem:[#allocation7 + $0x78] sm:$0xff]
    %v67 = vstv %s48
    %68 = vmatprep.subr.mxu0 0.0
    %69 = vmatpush1.msra.mxu0 %v66
    %70 = vmatprep.subr.mxu0 0.0
    %71 = vmatpush1.msra.mxu0 %v65
    %72 = vmatprep.subr.mxu0 0.0
    %73 = vmatpush1.msra.mxu0 %v64
    %74 = vmatprep.subr.mxu0 0.0
    %75 = vmatpush1.msra.mxu0 %v63
    %76 = vmatprep.subr.mxu0 0.0
    %77 = vmatpush1.msra.mxu0 %v62
    %78 = vmatprep.subr.mxu0 0.0
    %79 = vmatpush1.msra.mxu0 %v61
    %80 = vmatprep.subr.mxu0 0.0
    %81 = vmatpush1.msra.mxu0 %v60
    %82 = vmatprep.subr.mxu0 0.0
    %83 = vmatpush1.msra.mxu0 %v59
    %84 = vmatprep.subr.mxu0 0.0
    %85 = vmatpush1.msra.mxu0 %v58
    %86 = vmatprep.subr.mxu0 0.0
    %87 = vmatpush1.msra.mxu0 %v57
    %88 = vmatprep.subr.mxu0 0.0
    %89 = vmatpush1.msra.mxu0 %v56
    %90 = vmatprep.subr.mxu0 0.0
    %91 = vmatpush1.msra.mxu0 %v55
    %92 = vmatprep.subr.mxu0 0.0
    %93 = vmatpush1.msra.mxu0 %v54
    %94 = vmatprep.subr.mxu0 0.0
    %95 = vmatpush1.msra.mxu0 %v53
    %96 = vmatprep.subr.mxu0 0.0
    %97 = vmatpush1.msra.mxu0 %v52
    %98 = vmatprep.subr.mxu0 0.0
    %99 = vmatpush1.msra.mxu0 %v51
    %100 = vmatprep.subr.mxu0 0.0
    %101 = vmatpush2.msra.mxu0 0.0
    %102 = vmatprep.subr.mxu0 0.0
    %103 = vmatpush2.msra.mxu0 0.0
    %104 = vmatprep.subr.mxu0 0.0
    %105 = vmatpush2.msra.mxu0 0.0
    %106 = vmatprep.subr.mxu0 0.0
    %107 = vmatpush2.msra.mxu0 0.0
    %108 = vmatprep.subr.mxu0 0.0
    %109 = vmatpush2.msra.mxu0 0.0
    %110 = vmatprep.subr.mxu0 0.0
    %111 = vmatpush2.msra.mxu0 0.0
    %112 = vmatprep.subr.mxu0 0.0
    %113 = vmatpush2.msra.mxu0 0.0
    %114 = vmatprep.subr.mxu0 0.0
    %115 = vmatpush2.msra.mxu0 0.0
    %116 = vmatprep.subr.mxu0 0.0
    %117 = vmatpush2.msra.mxu0 0.0
    %118 = vmatprep.subr.mxu0 0.0
    %119 = vmatpush2.msra.mxu0 0.0
    %120 = vmatprep.subr.mxu0 0.0
    %121 = vmatpush2.msra.mxu0 0.0
    %122 = vmatprep.subr.mxu0 0.0
    %123 = vmatpush2.msra.mxu0 0.0
    %124 = vmatprep.subr.mxu0 0.0
    %125 = vmatpush2.msra.mxu0 0.0
    %126 = vmatprep.subr.mxu0 0.0
    %127 = vmatpush2.msra.mxu0 0.0
    %128 = vmatprep.subr.mxu0 0.0
    %129 = vmatpush2.msra.mxu0 0.0
    %130 = vmatprep.subr.mxu0 0.0
    %131 = vmatpush2.msra.mxu0 0.0
    %132 = vmatprep.mubr.f32.mxu0 0.0
    %133 = vmatmul.mubr.f32.gmra.mxu0 %v50
    %v134 = vpop.f32.mrf.mxu0
    %v135 = vadd.f32 %v67, %v134
    %v136 = vpop.f32.mrf.mxu0
    %137 = vdwg.mxu0
    %v138 = vtanh.pop %v135
    %v139 = vld [vmem:[%s3] sm:$0x1]
    %v141 = vlaneseq
    %v142 = vshrl.u32 %v141, 7
    %v143 = vsub.s32 0, %v142
    %v144 = vrot.slane %v139, %v143
    %v146 = vmul.f32 %v144, %v138
    %v147 = vadd.f32 %v50, %v146
    %148 = vst [vmem:[#allocation9] sm:$0xff] %v147
    %150 = vrot.lane.b32.xlu0 %v138, 97
    %v151 = vpop.permute.xlu0 %150
    %153 = vrot.lane.b32.xlu0 %v138, 66
    %v154 = vpop.permute.xlu0 %153
    %156 = vrot.lane.b32.xlu0 %v138, 35
    %v157 = vpop.permute.xlu0 %156
    %vm159 = vcmask 7168
    %v160 = vsel %vm159, %v138, %v151
    %vm161 = vcmask 15360
    %v162 = vsel %vm161, %v160, %v154
    %vm163 = vcmask 23552
    %v164 = vsel %vm163, %v162, %v157
    %v165 = vmul.f32 %v164, %v164
    %v166 = vsub.f32 1.0, %v165
    %v167 = vstv %s49
    %v168 = vmul.f32 %v166, %v167
    %v169 = vadd.f32 %v168, 1.0
    %v170 = vand.u32 2147483647, %v169
    %v171 = vadd.f32 %v170, 1e-08
    %v172 = vlog2.pop %v171
    %v173 = vmul.f32 %v172, 0.6931472
    %vm174 = vcmask 31744
    %175 = vst.msk [vmem:[%s5] sm:$0xff] %vm174, %v173
    // Predicated region
    $region22: #{tpu_custom_call.1} parent=1 // pred_check
      _
    $region23: #{tpu_custom_call.1} parent=1 // pred_check_branch
      %177 = sbr.rel (0) target = $region25
    $region24: #{tpu_custom_call.1} parent=1 // pred_region
      %s179 = ssub.s32 128, 128
      %180 = vsyncadd [#allocation6], %s179
      %s182 = sshll.u32 [#allocation9], 4
      %s183 = int_to_ptr.vmem [resolvable:$true] %s182
      %185 = dma.vmem_to_hbm [thread:$0]  %s183, 128, %s4, [#allocation6]
    $region25: #{tpu_custom_call.1} parent=1 // pred_fallthru
      _
    // Predicated region
    $region26: #{tpu_custom_call.1} parent=1 // pred_check
      _
    $region27: #{tpu_custom_call.1} parent=1 // pred_check_branch
      %187 = sbr.rel (0) target = $region29
    $region28: #{tpu_custom_call.1} parent=1 // pred_region
      _
    $region29: #{tpu_custom_call.1} parent=1 // pred_fallthru
      _
    // Predicated region
    $region30: #{tpu_custom_call.1} parent=1 // pred_check
      _
    $region31: #{tpu_custom_call.1} parent=1 // pred_check_branch
      %189 = sbr.rel (0) target = $region33
    $region32: #{tpu_custom_call.1} parent=1 // pred_region
      %190 = dma.done [#allocation6], 128
    $region33: #{tpu_custom_call.1} parent=1 // pred_fallthru
      _
    // Predicated region
    $region34: #{tpu_custom_call.1} parent=1 // pred_check
      _
    $region35: #{tpu_custom_call.1} parent=1 // pred_check_branch
      %192 = sbr.rel (0) target = $region37
    $region36: #{tpu_custom_call.1} parent=1 // pred_region
      _
    $region37: #{tpu_custom_call.1} parent=1 // pred_fallthru
      _
    %193 = vsyncpa [#allocation5], 1
    %194 = vsyncpa [#allocation8], 1
    %195 = vsyncpa [#allocation6], 1

</llo_original>
